<compile_context>
chip_gen: v6e
topology: v6e:2x2x1
jax: 0.10.0
libtpu: 0.0.40
codegen_flags: <defaults>
</compile_context>

<pallas_src>
import jax
import jax.numpy as jnp
from jax.experimental import pallas as pl
from jax.experimental.pallas import tpu as pltpu


def _gibbs_step(v_ref, uh_ref, uv_ref, w_ref, bh_ref, bv_ref):
    v = v_ref[...].astype(jnp.bfloat16)        # (TB, NV), binary -> exact in bf16
    w = w_ref[...]                             # (NH, NV), bf16
    bh = bh_ref[...]                           # (1, NH),  f32
    bv = bv_ref[...]                           # (1, NV),  f32
    u_h = uh_ref[...]                          # (TB, NH), f32 uniforms
    u_v = uv_ref[...]                          # (TB, NV), f32 uniforms

    # p_h = sigmoid(v @ W^T + bh): contract over NV, no transpose copy of W.
    logits_h = jax.lax.dot_general(
        v, w, dimension_numbers=(((1,), (1,)), ((), ())),
        preferred_element_type=jnp.float32) + bh
    p_h = jax.nn.sigmoid(logits_h)                              # (TB, NH) f32
    h_sample = (u_h < p_h).astype(jnp.float32)                  # bernoulli(p_h)

    # p_v = sigmoid(h @ W + bv): contract over NH.
    logits_v = jax.lax.dot_general(
        h_sample.astype(jnp.bfloat16), w,
        dimension_numbers=(((1,), (0,)), ((), ())),
        preferred_element_type=jnp.float32) + bv
    p_v = jax.nn.sigmoid(logits_v)                              # (TB, NV) f32
    v_sample = (u_v < p_v).astype(jnp.float32)                  # bernoulli(p_v)

    return p_h, h_sample, p_v, v_sample


def _forward_kernel(v_ref, uh_ref, uv_ref, w_ref, bh_ref, bv_ref, out_ref):
    _, _, _, v_sample = _gibbs_step(v_ref, uh_ref, uv_ref, w_ref, bh_ref, bv_ref)
    out_ref[...] = v_sample.astype(out_ref.dtype)


def _debug_kernel(v_ref, uh_ref, uv_ref, w_ref, bh_ref, bv_ref,
                  ph_ref, h_ref, pv_ref, vs_ref):
    p_h, h_sample, p_v, v_sample = _gibbs_step(
        v_ref, uh_ref, uv_ref, w_ref, bh_ref, bv_ref)
    ph_ref[...] = p_h
    h_ref[...] = h_sample
    pv_ref[...] = p_v
    vs_ref[...] = v_sample.astype(vs_ref.dtype)


def _pick_batch_tile(batch):
    for tb in (256, 128, 64, 32, 16, 8):
        if batch % tb == 0:
            return tb
    return batch  # odd / tiny batch: single full-extent tile


def _rbm_pallas(v, W, bh, bv, seed, *, debug):
    B, NV = v.shape
    NH = W.shape[0]
    assert W.shape == (NH, NV)

    TB = _pick_batch_tile(B)
    grid = (pl.cdiv(B, TB),)

    tiled = lambda i: (i, 0)      # batch-tiled operands
    pinned = lambda i: (0, 0)     # weights / biases resident across the grid

    in_specs = [
        pl.BlockSpec((TB, NV), tiled),     # v
        pl.BlockSpec((TB, NH), tiled),     # u_h (bernoulli uniforms, hidden)
        pl.BlockSpec((TB, NV), tiled),     # u_v (bernoulli uniforms, visible)
        pl.BlockSpec((NH, NV), pinned),    # W (bf16)
        pl.BlockSpec((1, NH), pinned),     # bh row
        pl.BlockSpec((1, NV), pinned),     # bv row
    ]

    if debug:
        kernel = _debug_kernel
        out_shape = (
            jax.ShapeDtypeStruct((B, NH), jnp.float32),   # p_h
            jax.ShapeDtypeStruct((B, NH), jnp.float32),   # h_sample
            jax.ShapeDtypeStruct((B, NV), jnp.float32),   # p_v
            jax.ShapeDtypeStruct((B, NV), v.dtype),       # v_sample
        )
        out_specs = (
            pl.BlockSpec((TB, NH), tiled),
            pl.BlockSpec((TB, NH), tiled),
            pl.BlockSpec((TB, NV), tiled),
            pl.BlockSpec((TB, NV), tiled),
        )
    else:
        kernel = _forward_kernel
        out_shape = jax.ShapeDtypeStruct((B, NV), v.dtype)
        out_specs = pl.BlockSpec((TB, NV), tiled)

    fn = pl.pallas_call(
        kernel,
        out_shape=out_shape,
        grid=grid,
        in_specs=in_specs,
        out_specs=out_specs,
        compiler_params=pltpu.CompilerParams(
            dimension_semantics=("parallel",),        # megacore sharding on v7x
            vmem_limit_bytes=48 * 1024 * 1024,        # under v7x's 64 MiB VMEM
        ),
    )

    # Host-side uniforms for the two bernoulli draws (distributionally equal to
    # torch.bernoulli; deterministic given `seed`).
    key = jax.random.PRNGKey(seed)
    k_h, k_v = jax.random.split(key)
    u_h = jax.random.uniform(k_h, (B, NH), dtype=jnp.float32)
    u_v = jax.random.uniform(k_v, (B, NV), dtype=jnp.float32)

    return fn(
        v.astype(jnp.float32),
        u_h,
        u_v,
        W.astype(jnp.bfloat16),                  # bf16 W: half the HBM/VMEM bytes
        bh.reshape(1, NH).astype(jnp.float32),
        bv.reshape(1, NV).astype(jnp.float32),
    )


def rbm_forward(v, W, bh, bv, seed=0):
    """One Gibbs step v -> h_sample -> v_sample (== RBM.forward)."""
    return _rbm_pallas(v, W, bh, bv, seed, debug=False)


def rbm_gibbs_debug(v, W, bh, bv, seed=0):
    """Same Gibbs step, also returning (p_h, h_sample, p_v, v_sample)."""
    return _rbm_pallas(v, W, bh, bv, seed, debug=True)


if __name__ == "__main__":
    key = jax.random.PRNGKey(0)
    k_w, k_v = jax.random.split(key, 2)

    # Small but lane-friendly shapes (NV, NH multiples of 128).
    batch, n_visible, n_hidden = 32, 256, 128

    # Parameter init mirroring the module: W = randn * 0.01, zero biases.
    W = jax.random.normal(k_w, (n_hidden, n_visible), jnp.float32) * 0.01
    bh = jnp.zeros((n_hidden,), jnp.float32)
    bv = jnp.zeros((n_visible,), jnp.float32)

    # Binary visible input, as in typical RBM usage.
    v = (jax.random.uniform(k_v, (batch, n_visible)) < 0.5).astype(jnp.float32)

    seed = 42
    v_sample = rbm_forward(v, W, bh, bv, seed=seed)
    jax.block_until_ready(v_sample)
    assert v_sample.shape == (batch, n_visible)
    assert v_sample.dtype == jnp.float32

    # ---- verification -----------------------------------------------------
    p_h_k, h_k, p_v_k, v_k = rbm_gibbs_debug(v, W, bh, bv, seed=seed)
    jax.block_until_ready(v_k)

    # (1) forward and debug kernels agree bitwise (same uniforms, same math).
    assert jnp.array_equal(v_sample, v_k), "forward/debug sample mismatch"

    # (2) deterministic math matches a plain-JAX reference (bf16 W, f32 accum).
    W16 = W.astype(jnp.bfloat16)
    p_h_ref = jax.nn.sigmoid(
        jax.lax.dot_general(v.astype(jnp.bfloat16), W16,
                            dimension_numbers=(((1,), (1,)), ((), ())),
                            preferred_element_type=jnp.float32) + bh)
    assert jnp.allclose(p_h_k, p_h_ref, atol=5e-3), "p_h mismatch vs reference"

    p_v_ref = jax.nn.sigmoid(
        jax.lax.dot_general(h_k.astype(jnp.bfloat16), W16,
                            dimension_numbers=(((1,), (0,)), ((), ())),
                            preferred_element_type=jnp.float32) + bv)
    assert jnp.allclose(p_v_k, p_v_ref, atol=5e-3), "p_v mismatch vs reference"

    # (3) samples are binary and statistically consistent with their own
    #     probabilities.
    assert bool(jnp.all((h_k == 0) | (h_k == 1)))
    assert bool(jnp.all((v_sample == 0) | (v_sample == 1)))
    assert abs(float(h_k.mean()) - float(p_h_k.mean())) < 0.05
    assert abs(float(v_sample.mean()) - float(p_v_k.mean())) < 0.05

    print("KERNEL_OK")
</pallas_src>

<mosaic_0001>
module attributes {stable_mosaic.version = 11 : i64} {
  func.func @_forward_kernel(%arg0: i32, %arg1: memref<32x256xf32, #tpu.memory_space<vmem>>, %arg2: memref<32x128xf32, #tpu.memory_space<vmem>>, %arg3: memref<32x256xf32, #tpu.memory_space<vmem>>, %arg4: memref<128x256xbf16, #tpu.memory_space<vmem>>, %arg5: memref<1x128xf32, #tpu.memory_space<vmem>>, %arg6: memref<1x256xf32, #tpu.memory_space<vmem>>, %arg7: memref<32x256xf32, #tpu.memory_space<vmem>>) attributes {dimension_semantics = [#tpu.dimension_semantics<parallel>], iteration_bounds = array<i64: 1>, scalar_prefetch = 0 : i64, scratch_operands = 0 : i64, tpu.core_type = #tpu.core_type<tc>, window_params = [{transform_indices = @transform_0, window_bounds = array<i64: 32, 256>}, {transform_indices = @transform_1, window_bounds = array<i64: 32, 128>}, {transform_indices = @transform_2, window_bounds = array<i64: 32, 256>}, {pipeline_mode = #tpu.pipeline_mode<synchronous>, transform_indices = @transform_3, window_bounds = array<i64: 128, 256>}, {pipeline_mode = #tpu.pipeline_mode<synchronous>, transform_indices = @transform_4, window_bounds = array<i64: 1, 128>}, {pipeline_mode = #tpu.pipeline_mode<synchronous>, transform_indices = @transform_5, window_bounds = array<i64: 1, 256>}, {transform_indices = @transform_6, window_bounds = array<i64: 32, 256>}]} {
    %c0 = arith.constant 0 : index
    %c0_0 = arith.constant 0 : index
    %0 = vector.load %arg1[%c0, %c0_0] : memref<32x256xf32, #tpu.memory_space<vmem>>, vector<32x256xf32>
    %1 = arith.truncf %0 : vector<32x256xf32> to vector<32x256xbf16>
    %c0_1 = arith.constant 0 : index
    %c0_2 = arith.constant 0 : index
    %2 = vector.load %arg4[%c0_1, %c0_2] : memref<128x256xbf16, #tpu.memory_space<vmem>>, vector<128x256xbf16>
    %c0_3 = arith.constant 0 : index
    %c0_4 = arith.constant 0 : index
    %3 = vector.load %arg5[%c0_3, %c0_4] : memref<1x128xf32, #tpu.memory_space<vmem>>, vector<1x128xf32>
    %c0_5 = arith.constant 0 : index
    %c0_6 = arith.constant 0 : index
    %4 = vector.load %arg6[%c0_5, %c0_6] : memref<1x256xf32, #tpu.memory_space<vmem>>, vector<1x256xf32>
    %c0_7 = arith.constant 0 : index
    %c0_8 = arith.constant 0 : index
    %5 = vector.load %arg2[%c0_7, %c0_8] : memref<32x128xf32, #tpu.memory_space<vmem>>, vector<32x128xf32>
    %c0_9 = arith.constant 0 : index
    %c0_10 = arith.constant 0 : index
    %6 = vector.load %arg3[%c0_9, %c0_10] : memref<32x256xf32, #tpu.memory_space<vmem>>, vector<32x256xf32>
    %cst = arith.constant dense<0.000000e+00> : vector<32x128xf32>
    %7 = tpu.matmul %1, %2, %cst {dimension_numbers = #tpu.dot_dimension_numbers<[1], [1], [0], [0], [0, 0, 1, 0], [], []>} : vector<32x256xbf16>, vector<128x256xbf16>, vector<32x128xf32> -> vector<32x128xf32>
    %8 = vector.broadcast %3 : vector<1x128xf32> to vector<32x128xf32>
    %9 = arith.addf %7, %8 : vector<32x128xf32>
    %10 = arith.negf %9 : vector<32x128xf32>
    %11 = math.exp %10 : vector<32x128xf32>
    %cst_11 = arith.constant 1.000000e+00 : f32
    %12 = vector.broadcast %cst_11 : f32 to vector<32x128xf32>
    %13 = arith.addf %12, %11 : vector<32x128xf32>
    %14 = arith.divf %12, %13 : vector<32x128xf32>
    %15 = arith.cmpf olt, %5, %14 : vector<32x128xf32>
    %16 = arith.extui %15 : vector<32x128xi1> to vector<32x128xi32>
    %17 = arith.sitofp %16 : vector<32x128xi32> to vector<32x128xf32>
    %18 = arith.truncf %17 : vector<32x128xf32> to vector<32x128xbf16>
    %cst_12 = arith.constant dense<0.000000e+00> : vector<32x256xf32>
    %19 = tpu.matmul %18, %2, %cst_12 {dimension_numbers = #tpu.dot_dimension_numbers<[1], [0], [0], [1], [0, 0, 1, 1], [], []>} : vector<32x128xbf16>, vector<128x256xbf16>, vector<32x256xf32> -> vector<32x256xf32>
    %20 = vector.broadcast %4 : vector<1x256xf32> to vector<32x256xf32>
    %21 = arith.addf %19, %20 : vector<32x256xf32>
    %22 = arith.negf %21 : vector<32x256xf32>
    %23 = math.exp %22 : vector<32x256xf32>
    %cst_13 = arith.constant 1.000000e+00 : f32
    %24 = vector.broadcast %cst_13 : f32 to vector<32x256xf32>
    %25 = arith.addf %24, %23 : vector<32x256xf32>
    %26 = arith.divf %24, %25 : vector<32x256xf32>
    %27 = arith.cmpf olt, %6, %26 : vector<32x256xf32>
    %28 = arith.extui %27 : vector<32x256xi1> to vector<32x256xi32>
    %29 = arith.sitofp %28 : vector<32x256xi32> to vector<32x256xf32>
    %c0_14 = arith.constant 0 : index
    %c0_15 = arith.constant 0 : index
    %30 = vector.load %arg7[%c0_14, %c0_15] : memref<32x256xf32, #tpu.memory_space<vmem>>, vector<32x256xf32>
    tpu.vector_store %arg7[%c0_14, %c0_15], %29 {strides = array<i32>} : memref<32x256xf32, #tpu.memory_space<vmem>>, vector<32x256xf32>,
    return
  }
  func.func @transform_0(%arg0: i32) -> (i32, i32) {
    %c0_i32 = arith.constant 0 : i32
    %c0_i32_0 = arith.constant 0 : i32
    return %arg0, %c0_i32 : i32, i32
  }
  func.func @transform_1(%arg0: i32) -> (i32, i32) {
    %c0_i32 = arith.constant 0 : i32
    %c0_i32_0 = arith.constant 0 : i32
    return %arg0, %c0_i32 : i32, i32
  }
  func.func @transform_2(%arg0: i32) -> (i32, i32) {
    %c0_i32 = arith.constant 0 : i32
    %c0_i32_0 = arith.constant 0 : i32
    return %arg0, %c0_i32 : i32, i32
  }
  func.func @transform_3(%arg0: i32) -> (i32, i32) {
    %c0_i32 = arith.constant 0 : i32
    %c0_i32_0 = arith.constant 0 : i32
    %c0_i32_1 = arith.constant 0 : i32
    return %c0_i32, %c0_i32_0 : i32, i32
  }
  func.func @transform_4(%arg0: i32) -> (i32, i32) {
    %c0_i32 = arith.constant 0 : i32
    %c0_i32_0 = arith.constant 0 : i32
    %c0_i32_1 = arith.constant 0 : i32
    return %c0_i32, %c0_i32_0 : i32, i32
  }
  func.func @transform_5(%arg0: i32) -> (i32, i32) {
    %c0_i32 = arith.constant 0 : i32
    %c0_i32_0 = arith.constant 0 : i32
    %c0_i32_1 = arith.constant 0 : i32
    return %c0_i32, %c0_i32_0 : i32, i32
  }
  func.func @transform_6(%arg0: i32) -> (i32, i32) {
    %c0_i32 = arith.constant 0 : i32
    %c0_i32_0 = arith.constant 0 : i32
    return %arg0, %c0_i32 : i32, i32
  }
}

</mosaic_0001>

<llo_original>
// kernel: tpu_custom_call.1
$region0: #{tpu_custom_call.1}
  #allocation0 [shape = 'u32[]', space=smem, size = 0x4, offset = 0x4, fixed_abs, tag = 'smem constant byte address 0x4 - core index']
  #allocation1 [shape = 'u32[144,128]{1,0:T(1,128)}', space=vmem, size = 0x12000, scoped, tag = 'internal scratch']
  %s0 = inlined_call_operand.hbm [shape: f32[32,256], index: 0, kind: input, shape index: {}]
  %s1 = inlined_call_operand.hbm [shape: f32[32,128], index: 1, kind: input, shape index: {}]
  %s2 = inlined_call_operand.hbm [shape: f32[32,256], index: 2, kind: input, shape index: {}]
  %s3 = inlined_call_operand.hbm [shape: bf16[128,256], index: 3, kind: input, shape index: {}]
  %s4 = inlined_call_operand.vmem [shape: f32[1,128], index: 4, kind: input, shape index: {}]
  %s5 = inlined_call_operand.vmem [shape: f32[1,256], index: 5, kind: input, shape index: {}]
  %s6 = inlined_call_operand.hbm [shape: f32[32,256], index: 6, kind: output, shape index: {}]
  %s7 = sld [smem:[#allocation0]]
  $region50: #{tpu_custom_call.1} parent=0
    _
  %s9 = ssub.s32 1, %s7
  %s10 = scalar_select 0, %s9, %s7
  $region1: #{tpu_custom_call.1} parent=0
    #allocation2 [shape = 'u8[32768]{0}', space=vmem, size = 0x8000, scoped, tag = 'input window, operand 0, single buffered']
    #allocation3 [shape = 's32[1]{0}', space=sflag, size = 0x4, scoped, tag = 'scoped memory for tpu_custom_call.1']
    #allocation4 [shape = 's32[1]{0}', space=sflag, size = 0x4, scoped, tag = 'scoped memory for tpu_custom_call.1']
    #allocation5 [shape = 'u8[16384]{0}', space=vmem, size = 0x4000, scoped, tag = 'input window, operand 1, single buffered']
    #allocation6 [shape = 's32[1]{0}', space=sflag, size = 0x4, scoped, tag = 'scoped memory for tpu_custom_call.1']
    #allocation7 [shape = 'u8[32768]{0}', space=vmem, size = 0x8000, scoped, tag = 'input window, operand 2, single buffered']
    #allocation8 [shape = 'u8[65536]{0}', space=vmem, size = 0x10000, scoped, tag = 'input window, operand 3, single buffered']
    #allocation9 [shape = 's32[1]{0}', space=sflag, size = 0x4, scoped, tag = 'scoped memory for tpu_custom_call.1']
    #allocation10 [shape = 'u8[32768]{0}', space=vmem, size = 0x8000, scoped, tag = 'output window, operand 0, single buffered']
    %11 = vsyncpa [#allocation3], 0
    %12 = vsyncpa [#allocation6], 0
    %13 = vsyncpa [#allocation9], 0
    %14 = vsyncpa [#allocation4], 0
    // Predicated region
    $region2: #{tpu_custom_call.1} parent=1 // pred_check
      _
    $region3: #{tpu_custom_call.1} parent=1 // pred_check_branch
      %16 = sbr.rel (0) target = $region5
    $region4: #{tpu_custom_call.1} parent=1 // pred_region
      %s18 = ssub.s32 1024, 1024
      %19 = vsyncadd [#allocation3], %s18
      %s20 = sshll.u32 [#allocation2], 4
      %s21 = int_to_ptr.vmem [resolvable:$true] %s20
      %26 = dma.hbm_to_vmem [thread:$0]  %s0, 1024, %s21, [#allocation3], 256, 256, 16
    $region5: #{tpu_custom_call.1} parent=1 // pred_fallthru
      _
    // Predicated region
    $region6: #{tpu_custom_call.1} parent=1 // pred_check
      _
    $region7: #{tpu_custom_call.1} parent=1 // pred_check_branch
      %28 = sbr.rel (0) target = $region9
    $region8: #{tpu_custom_call.1} parent=1 // pred_region
      %s30 = ssub.s32 512, 512
      %31 = vsyncadd [#allocation6], %s30
      %s32 = sshll.u32 [#allocation5], 4
      %s33 = int_to_ptr.vmem [resolvable:$true] %s32
      %38 = dma.hbm_to_vmem [thread:$0]  %s1, 512, %s33, [#allocation6], 128, 128, 8
    $region9: #{tpu_custom_call.1} parent=1 // pred_fallthru
      _
    // Predicated region
    $region10: #{tpu_custom_call.1} parent=1 // pred_check
      _
    $region11: #{tpu_custom_call.1} parent=1 // pred_check_branch
      %40 = sbr.rel (0) target = $region13
    $region12: #{tpu_custom_call.1} parent=1 // pred_region
      %s42 = ssub.s32 1024, 1024
      %43 = vsyncadd [#allocation6], %s42
      %s44 = sshll.u32 [#allocation7], 4
      %s45 = int_to_ptr.vmem [resolvable:$true] %s44
      %50 = dma.hbm_to_vmem [thread:$0]  %s2, 1024, %s45, [#allocation6], 256, 256, 16
    $region13: #{tpu_custom_call.1} parent=1 // pred_fallthru
      _
    // Predicated region
    $region14: #{tpu_custom_call.1} parent=1 // pred_check
      _
    $region15: #{tpu_custom_call.1} parent=1 // pred_check_branch
      %52 = sbr.rel (0) target = $region17
    $region16: #{tpu_custom_call.1} parent=1 // pred_region
      %s54 = ssub.s32 2048, 2048
      %55 = vsyncadd [#allocation9], %s54
      %s56 = sshll.u32 [#allocation8], 4
      %s57 = int_to_ptr.vmem [resolvable:$true] %s56
      %62 = dma.hbm_to_vmem [thread:$0]  %s3, 2048, %s57, [#allocation9], 128, 128, 8
    $region17: #{tpu_custom_call.1} parent=1 // pred_fallthru
      _
    // Predicated region
    $region18: #{tpu_custom_call.1} parent=1 // pred_check
      _
    $region19: #{tpu_custom_call.1} parent=1 // pred_check_branch
      %64 = sbr.rel (0) target = $region21
    $region20: #{tpu_custom_call.1} parent=1 // pred_region
      _
    $region21: #{tpu_custom_call.1} parent=1 // pred_fallthru
      _
    // Predicated region
    $region22: #{tpu_custom_call.1} parent=1 // pred_check
      _
    $region23: #{tpu_custom_call.1} parent=1 // pred_check_branch
      %66 = sbr.rel (0) target = $region25
    $region24: #{tpu_custom_call.1} parent=1 // pred_region
      _
    $region25: #{tpu_custom_call.1} parent=1 // pred_fallthru
      _
    // Predicated region
    $region26: #{tpu_custom_call.1} parent=1 // pred_check
      _
    $region27: #{tpu_custom_call.1} parent=1 // pred_check_branch
      %68 = sbr.rel (0) target = $region29
    $region28: #{tpu_custom_call.1} parent=1 // pred_region
      %69 = dma.done [#allocation3], 1024
    $region29: #{tpu_custom_call.1} parent=1 // pred_fallthru
      _
    // Predicated region
    $region30: #{tpu_custom_call.1} parent=1 // pred_check
      _
    $region31: #{tpu_custom_call.1} parent=1 // pred_check_branch
      %71 = sbr.rel (0) target = $region33
    $region32: #{tpu_custom_call.1} parent=1 // pred_region
      %72 = dma.done [#allocation6], 512
    $region33: #{tpu_custom_call.1} parent=1 // pred_fallthru
      _
    // Predicated region
    $region34: #{tpu_custom_call.1} parent=1 // pred_check
      _
    $region35: #{tpu_custom_call.1} parent=1 // pred_check_branch
      %74 = sbr.rel (0) target = $region37
    $region36: #{tpu_custom_call.1} parent=1 // pred_region
      %75 = dma.done [#allocation6], 1024
    $region37: #{tpu_custom_call.1} parent=1 // pred_fallthru
      _
    // Predicated region
    $region38: #{tpu_custom_call.1} parent=1 // pred_check
      _
    $region39: #{tpu_custom_call.1} parent=1 // pred_check_branch
      %77 = sbr.rel (0) target = $region41
    $region40: #{tpu_custom_call.1} parent=1 // pred_region
      %78 = dma.done [#allocation9], 2048
    $region41: #{tpu_custom_call.1} parent=1 // pred_fallthru
      _
    %v80 = vld [vmem:[#allocation2] sm:$0xff]
    %v81 = vld [vmem:[#allocation2 + $0x8] sm:$0xff]
    %v82 = vld [vmem:[#allocation2 + $0x10] sm:$0xff]
    %v83 = vld [vmem:[#allocation2 + $0x18] sm:$0xff]
    %v84 = vld [vmem:[#allocation2 + $0x20] sm:$0xff]
    %v85 = vld [vmem:[#allocation2 + $0x28] sm:$0xff]
    %v86 = vld [vmem:[#allocation2 + $0x30] sm:$0xff]
    %v87 = vld [vmem:[#allocation2 + $0x38] sm:$0xff]
    %v88 = vpack.c.bf16 %v82, %v80
    %v89 = vpack.c.bf16 %v83, %v81
    %v90 = vpack.c.bf16 %v86, %v84
    %v91 = vpack.c.bf16 %v87, %v85
    %v92 = vld [vmem:[#allocation8] sm:$0xff]
    %v93 = vld [vmem:[#allocation8 + $0x8] sm:$0xff]
    %v94 = vld [vmem:[#allocation8 + $0x10] sm:$0xff]
    %v95 = vld [vmem:[#allocation8 + $0x18] sm:$0xff]
    %v96 = vld [vmem:[#allocation8 + $0x20] sm:$0xff]
    %v97 = vld [vmem:[#allocation8 + $0x28] sm:$0xff]
    %v98 = vld [vmem:[#allocation8 + $0x30] sm:$0xff]
    %v99 = vld [vmem:[#allocation8 + $0x38] sm:$0xff]
    %v100 = vld [vmem:[#allocation8 + $0x40] sm:$0xff]
    %v101 = vld [vmem:[#allocation8 + $0x48] sm:$0xff]
    %v102 = vld [vmem:[#allocation8 + $0x50] sm:$0xff]
    %v103 = vld [vmem:[#allocation8 + $0x58] sm:$0xff]
    %v104 = vld [vmem:[#allocation8 + $0x60] sm:$0xff]
    %v105 = vld [vmem:[#allocation8 + $0x68] sm:$0xff]
    %v106 = vld [vmem:[#allocation8 + $0x70] sm:$0xff]
    %v107 = vld [vmem:[#allocation8 + $0x78] sm:$0xff]
    %v108 = vld [vmem:[%s4] sm:$0x1]
    %v109 = vld [vmem:[%s5] sm:$0x3]
    %v110 = vld [vmem:[#allocation5] sm:$0xff]
    %v111 = vld [vmem:[#allocation5 + $0x8] sm:$0xff]
    %v112 = vld [vmem:[#allocation5 + $0x10] sm:$0xff]
    %v113 = vld [vmem:[#allocation5 + $0x18] sm:$0xff]
    %v114 = vld [vmem:[#allocation7] sm:$0xff]
    %v115 = vld [vmem:[#allocation7 + $0x8] sm:$0xff]
    %v116 = vld [vmem:[#allocation7 + $0x10] sm:$0xff]
    %v117 = vld [vmem:[#allocation7 + $0x18] sm:$0xff]
    %v118 = vld [vmem:[#allocation7 + $0x20] sm:$0xff]
    %v119 = vld [vmem:[#allocation7 + $0x28] sm:$0xff]
    %v120 = vld [vmem:[#allocation7 + $0x30] sm:$0xff]
    %v121 = vld [vmem:[#allocation7 + $0x38] sm:$0xff]
    %v123 = vlaneseq
    %v124 = vshrl.u32 %v123, 7
    %v125 = vsub.s32 0, %v124
    %v126 = vrot.slane %v108, %v125
    %v144 = vunpack.c.l.b16 %v92
    %v145 = vunpack.c.h.b16 %v92
    %v146 = vunpack.c.l.b16 %v93
    %v147 = vunpack.c.h.b16 %v93
    %v148 = vunpack.c.l.b16 %v94
    %v149 = vunpack.c.h.b16 %v94
    %v150 = vunpack.c.l.b16 %v95
    %v151 = vunpack.c.h.b16 %v95
    %v152 = vunpack.c.l.b16 %v96
    %v153 = vunpack.c.h.b16 %v96
    %v154 = vunpack.c.l.b16 %v97
    %v155 = vunpack.c.h.b16 %v97
    %v156 = vunpack.c.l.b16 %v98
    %v157 = vunpack.c.h.b16 %v98
    %v158 = vunpack.c.l.b16 %v99
    %v159 = vunpack.c.h.b16 %v99
    %v160 = vunpack.c.l.b16 %v100
    %v161 = vunpack.c.h.b16 %v100
    %v162 = vunpack.c.l.b16 %v101
    %v163 = vunpack.c.h.b16 %v101
    %v164 = vunpack.c.l.b16 %v102
    %v165 = vunpack.c.h.b16 %v102
    %v166 = vunpack.c.l.b16 %v103
    %v167 = vunpack.c.h.b16 %v103
    %v168 = vunpack.c.l.b16 %v104
    %v169 = vunpack.c.h.b16 %v104
    %v170 = vunpack.c.l.b16 %v105
    %v171 = vunpack.c.h.b16 %v105
    %v172 = vunpack.c.l.b16 %v106
    %v173 = vunpack.c.h.b16 %v106
    %v174 = vunpack.c.l.b16 %v107
    %v175 = vunpack.c.h.b16 %v107
    %v176 = vpack.c.b16 %v146, %v144
    %v177 = vpack.c.b16 %v147, %v145
    %v178 = vpack.c.b16 %v150, %v148
    %v179 = vpack.c.b16 %v151, %v149
    %v180 = vpack.c.b16 %v154, %v152
    %v181 = vpack.c.b16 %v155, %v153
    %v182 = vpack.c.b16 %v158, %v156
    %v183 = vpack.c.b16 %v159, %v157
    %v184 = vpack.c.b16 %v162, %v160
    %v185 = vpack.c.b16 %v163, %v161
    %v186 = vpack.c.b16 %v166, %v164
    %v187 = vpack.c.b16 %v167, %v165
    %v188 = vpack.c.b16 %v170, %v168
    %v189 = vpack.c.b16 %v171, %v169
    %v190 = vpack.c.b16 %v174, %v172
    %v191 = vpack.c.b16 %v175, %v173
    %208 = vmatprep.subr.bf16.mxu0 %v191
    %209 = vmatpush1.bf16.xpose.msra.mxu0 %v190
    %210 = vmatprep.subr.bf16.mxu0 %v189
    %211 = vmatpush1.bf16.xpose.msra.mxu0 %v188
    %212 = vmatprep.subr.bf16.mxu0 %v187
    %213 = vmatpush1.bf16.xpose.msra.mxu0 %v186
    %214 = vmatprep.subr.bf16.mxu0 %v185
    %215 = vmatpush1.bf16.xpose.msra.mxu0 %v184
    %216 = vmatprep.subr.bf16.mxu0 %v183
    %217 = vmatpush1.bf16.xpose.msra.mxu0 %v182
    %218 = vmatprep.subr.bf16.mxu0 %v181
    %219 = vmatpush1.bf16.xpose.msra.mxu0 %v180
    %220 = vmatprep.subr.bf16.mxu0 %v179
    %221 = vmatpush1.bf16.xpose.msra.mxu0 %v178
    %222 = vmatprep.subr.bf16.mxu0 %v177
    %223 = vmatpush1.bf16.xpose.msra.mxu0 %v176
    %224 = vmatprep.subr.bf16.mxu0 0
    %225 = vmatpush2.bf16.xpose.msra.mxu0 0
    %226 = vmatprep.subr.bf16.mxu0 0
    %227 = vmatpush2.bf16.xpose.msra.mxu0 0
    %228 = vmatprep.subr.bf16.mxu0 0
    %229 = vmatpush2.bf16.xpose.msra.mxu0 0
    %230 = vmatprep.subr.bf16.mxu0 0
    %231 = vmatpush2.bf16.xpose.msra.mxu0 0
    %232 = vmatprep.subr.bf16.mxu0 0
    %233 = vmatpush2.bf16.xpose.msra.mxu0 0
    %234 = vmatprep.subr.bf16.mxu0 0
    %235 = vmatpush2.bf16.xpose.msra.mxu0 0
    %236 = vmatprep.subr.bf16.mxu0 0
    %237 = vmatpush2.bf16.xpose.msra.mxu0 0
    %238 = vmatprep.subr.bf16.mxu0 0
    %239 = vmatpush2.bf16.xpose.msra.mxu0 0
    %240 = vmatprep.mubr.bf16.mxu0 %v89
    %241 = vmatmul.mubr.bf16.gmra.mxu0 %v88
    %v242 = vpop.f32.mrf.mxu0
    %v243 = vadd.f32 %v126, %v242
    %v244 = vpop.f32.mrf.mxu0
    %v245 = vpop.f32.mrf.mxu0
    %v246 = vadd.f32 %v126, %v245
    %v247 = vpop.f32.mrf.mxu0
    %248 = vmatprep.mubr.bf16.mxu0 %v91
    %249 = vmatmul.mubr.bf16.gmra.mxu0 %v90
    %v250 = vpop.f32.mrf.mxu0
    %v251 = vadd.f32 %v126, %v250
    %v252 = vpop.f32.mrf.mxu0
    %v253 = vpop.f32.mrf.mxu0
    %v254 = vadd.f32 %v126, %v253
    %v255 = vpop.f32.mrf.mxu0
    %256 = vdwg.mxu0
    %v257 = vxor.u32 %v243, 2147483648
    %v258 = vxor.u32 %v246, 2147483648
    %v259 = vxor.u32 %v251, 2147483648
    %v260 = vxor.u32 %v254, 2147483648
    %v261 = vmul.f32 %v257, 1.442695
    %v262 = vpow.pop %v261
    %v263 = vmul.f32 %v258, 1.442695
    %v264 = vpow.pop %v263
    %v265 = vmul.f32 %v259, 1.442695
    %v266 = vpow.pop %v265
    %v267 = vmul.f32 %v260, 1.442695
    %v268 = vpow.pop %v267
    %v269 = vadd.f32 %v262, 1.0
    %v270 = vadd.f32 %v264, 1.0
    %v271 = vadd.f32 %v266, 1.0
    %v272 = vadd.f32 %v268, 1.0
    %v273 = vrcp.pop %v269
    %v274 = vmul.f32 1.0, %v273
    %v275 = vrcp.pop %v270
    %v276 = vmul.f32 1.0, %v275
    %v277 = vrcp.pop %v271
    %v278 = vmul.f32 1.0, %v277
    %v279 = vrcp.pop %v272
    %v280 = vmul.f32 1.0, %v279
    %vm281 = vcmp.lt.f32.partialorder %v110, %v274
    %vm282 = vcmp.lt.f32.partialorder %v111, %v276
    %vm283 = vcmp.lt.f32.partialorder %v112, %v278
    %vm284 = vcmp.lt.f32.partialorder %v113, %v280
    %v285 = vsel %vm281, 1, 0
    %v286 = vsel %vm282, 1, 0
    %v287 = vsel %vm283, 1, 0
    %v288 = vsel %vm284, 1, 0
    %v289 = vcvt.s32.f32 %v285
    %v290 = vcvt.s32.f32 %v286
    %v291 = vcvt.s32.f32 %v287
    %v292 = vcvt.s32.f32 %v288
    %v293 = vpack.c.bf16 %v290, %v289
    %v294 = vpack.c.bf16 %v292, %v291
    %v296 = vlaneseq
    %v297 = vshrl.u32 %v296, 7
    %v298 = vsub.s32 0, %v297
    %v299 = vrot.slane %v109, %v298
    %v300 = vlaneseq
    %v301 = vshrl.u32 %v300, 7
    %v302 = vsub.s32 1, %v301
    %v303 = vrot.slane %v109, %v302
    %306 = vmatprep.subr.bf16.mxu0 %v191
    %307 = vmatpush1.bf16.msra.mxu0 %v190
    %308 = vmatprep.subr.bf16.mxu0 %v189
    %309 = vmatpush1.bf16.msra.mxu0 %v188
    %310 = vmatprep.subr.bf16.mxu0 %v187
    %311 = vmatpush1.bf16.msra.mxu0 %v186
    %312 = vmatprep.subr.bf16.mxu0 %v185
    %313 = vmatpush1.bf16.msra.mxu0 %v184
    %314 = vmatprep.subr.bf16.mxu0 %v183
    %315 = vmatpush1.bf16.msra.mxu0 %v182
    %316 = vmatprep.subr.bf16.mxu0 %v181
    %317 = vmatpush1.bf16.msra.mxu0 %v180
    %318 = vmatprep.subr.bf16.mxu0 %v179
    %319 = vmatpush1.bf16.msra.mxu0 %v178
    %320 = vmatprep.subr.bf16.mxu0 %v177
    %321 = vmatpush1.bf16.msra.mxu0 %v176
    %322 = vmatprep.subr.bf16.mxu0 0
    %323 = vmatpush2.bf16.msra.mxu0 0
    %324 = vmatprep.subr.bf16.mxu0 0
    %325 = vmatpush2.bf16.msra.mxu0 0
    %326 = vmatprep.subr.bf16.mxu0 0
    %327 = vmatpush2.bf16.msra.mxu0 0
    %328 = vmatprep.subr.bf16.mxu0 0
    %329 = vmatpush2.bf16.msra.mxu0 0
    %330 = vmatprep.subr.bf16.mxu0 0
    %331 = vmatpush2.bf16.msra.mxu0 0
    %332 = vmatprep.subr.bf16.mxu0 0
    %333 = vmatpush2.bf16.msra.mxu0 0
    %334 = vmatprep.subr.bf16.mxu0 0
    %335 = vmatpush2.bf16.msra.mxu0 0
    %336 = vmatprep.subr.bf16.mxu0 0
    %337 = vmatpush2.bf16.msra.mxu0 0
    %338 = vmatprep.mubr.bf16.mxu0 0
    %339 = vmatmul.mubr.bf16.gmra.mxu0 %v293
    %v340 = vpop.f32.mrf.mxu0
    %v341 = vadd.f32 %v299, %v340
    %v342 = vpop.f32.mrf.mxu0
    %v343 = vadd.f32 %v303, %v342
    %v344 = vpop.f32.mrf.mxu0
    %v345 = vadd.f32 %v299, %v344
    %v346 = vpop.f32.mrf.mxu0
    %v347 = vadd.f32 %v303, %v346
    %348 = vmatprep.mubr.bf16.mxu0 0
    %349 = vmatmul.mubr.bf16.gmra.mxu0 %v294
    %v350 = vpop.f32.mrf.mxu0
    %v351 = vadd.f32 %v299, %v350
    %v352 = vpop.f32.mrf.mxu0
    %v353 = vadd.f32 %v303, %v352
    %v354 = vpop.f32.mrf.mxu0
    %v355 = vadd.f32 %v299, %v354
    %v356 = vpop.f32.mrf.mxu0
    %v357 = vadd.f32 %v303, %v356
    %358 = vdwg.mxu0
    %v359 = vxor.u32 %v341, 2147483648
    %v360 = vxor.u32 %v343, 2147483648
    %v361 = vxor.u32 %v345, 2147483648
    %v362 = vxor.u32 %v347, 2147483648
    %v363 = vxor.u32 %v351, 2147483648
    %v364 = vxor.u32 %v353, 2147483648
    %v365 = vxor.u32 %v355, 2147483648
    %v366 = vxor.u32 %v357, 2147483648
    %v367 = vmul.f32 %v359, 1.442695
    %v368 = vpow.pop %v367
    %v369 = vmul.f32 %v360, 1.442695
    %v370 = vpow.pop %v369
    %v371 = vmul.f32 %v361, 1.442695
    %v372 = vpow.pop %v371
    %v373 = vmul.f32 %v362, 1.442695
    %v374 = vpow.pop %v373
    %v375 = vmul.f32 %v363, 1.442695
    %v376 = vpow.pop %v375
    %v377 = vmul.f32 %v364, 1.442695
    %v378 = vpow.pop %v377
    %v379 = vmul.f32 %v365, 1.442695
    %v380 = vpow.pop %v379
    %v381 = vmul.f32 %v366, 1.442695
    %v382 = vpow.pop %v381
    %v383 = vadd.f32 %v368, 1.0
    %v384 = vadd.f32 %v370, 1.0
    %v385 = vadd.f32 %v372, 1.0
    %v386 = vadd.f32 %v374, 1.0
    %v387 = vadd.f32 %v376, 1.0
    %v388 = vadd.f32 %v378, 1.0
    %v389 = vadd.f32 %v380, 1.0
    %v390 = vadd.f32 %v382, 1.0
    %v391 = vrcp.pop %v383
    %v392 = vmul.f32 1.0, %v391
    %v393 = vrcp.pop %v384
    %v394 = vmul.f32 1.0, %v393
    %v395 = vrcp.pop %v385
    %v396 = vmul.f32 1.0, %v395
    %v397 = vrcp.pop %v386
    %v398 = vmul.f32 1.0, %v397
    %v399 = vrcp.pop %v387
    %v400 = vmul.f32 1.0, %v399
    %v401 = vrcp.pop %v388
    %v402 = vmul.f32 1.0, %v401
    %v403 = vrcp.pop %v389
    %v404 = vmul.f32 1.0, %v403
    %v405 = vrcp.pop %v390
    %v406 = vmul.f32 1.0, %v405
    %vm407 = vcmp.lt.f32.partialorder %v114, %v392
    %vm408 = vcmp.lt.f32.partialorder %v115, %v394
    %vm409 = vcmp.lt.f32.partialorder %v116, %v396
    %vm410 = vcmp.lt.f32.partialorder %v117, %v398
    %vm411 = vcmp.lt.f32.partialorder %v118, %v400
    %vm412 = vcmp.lt.f32.partialorder %v119, %v402
    %vm413 = vcmp.lt.f32.partialorder %v120, %v404
    %vm414 = vcmp.lt.f32.partialorder %v121, %v406
    %v415 = vsel %vm407, 1, 0
    %v416 = vsel %vm408, 1, 0
    %v417 = vsel %vm409, 1, 0
    %v418 = vsel %vm410, 1, 0
    %v419 = vsel %vm411, 1, 0
    %v420 = vsel %vm412, 1, 0
    %v421 = vsel %vm413, 1, 0
    %v422 = vsel %vm414, 1, 0
    %v423 = vcvt.s32.f32 %v415
    %v424 = vcvt.s32.f32 %v416
    %v425 = vcvt.s32.f32 %v417
    %v426 = vcvt.s32.f32 %v418
    %v427 = vcvt.s32.f32 %v419
    %v428 = vcvt.s32.f32 %v420
    %v429 = vcvt.s32.f32 %v421
    %v430 = vcvt.s32.f32 %v422
    %431 = vst [vmem:[#allocation10] sm:$0xff] %v423
    %432 = vst [vmem:[#allocation10 + $0x8] sm:$0xff] %v424
    %433 = vst [vmem:[#allocation10 + $0x10] sm:$0xff] %v425
    %434 = vst [vmem:[#allocation10 + $0x18] sm:$0xff] %v426
    %435 = vst [vmem:[#allocation10 + $0x20] sm:$0xff] %v427
    %436 = vst [vmem:[#allocation10 + $0x28] sm:$0xff] %v428
    %437 = vst [vmem:[#allocation10 + $0x30] sm:$0xff] %v429
    %438 = vst [vmem:[#allocation10 + $0x38] sm:$0xff] %v430
    // Predicated region
    $region42: #{tpu_custom_call.1} parent=1 // pred_check
      _
    $region43: #{tpu_custom_call.1} parent=1 // pred_check_branch
      %440 = sbr.rel (0) target = $region45
    $region44: #{tpu_custom_call.1} parent=1 // pred_region
      %s442 = ssub.s32 1024, 1024
      %443 = vsyncadd [#allocation4], %s442
      %s444 = sshll.u32 [#allocation10], 4
      %s445 = int_to_ptr.vmem [resolvable:$true] %s444
      %450 = dma.vmem_to_hbm [thread:$0]  %s445, 1024, %s6, [#allocation4], 256, 256, 16
    $region45: #{tpu_custom_call.1} parent=1 // pred_fallthru
      _
    // Predicated region
    $region46: #{tpu_custom_call.1} parent=1 // pred_check
      _
    $region47: #{tpu_custom_call.1} parent=1 // pred_check_branch
      %452 = sbr.rel (0) target = $region49
    $region48: #{tpu_custom_call.1} parent=1 // pred_region
      %453 = dma.done [#allocation4], 1024
    $region49: #{tpu_custom_call.1} parent=1 // pred_fallthru
      _
    %454 = vsyncpa [#allocation3], 1
    %455 = vsyncpa [#allocation6], 1
    %456 = vsyncpa [#allocation9], 1
    %457 = vsyncpa [#allocation4], 1

</llo_original>
